<compile_context>
chip_gen: v5e
topology: v5e:2x2
jax: 0.10.0
libtpu: 0.0.40
codegen_flags: <defaults>
</compile_context>

<pallas_src>
import functools
import math

import jax
import jax.numpy as jnp
from jax import lax
from jax.experimental import pallas as pl
from jax.experimental.pallas import tpu as pltpu

_INV_SQRT2 = 1.0 / math.sqrt(2.0)


def _round_up(a, b):
    return (a + b - 1) // b * b


def _gelu_f32(h, exact):
    if exact:
        # Exact erf formulation == torch.nn.GELU() default.
        return 0.5 * h * (1.0 + lax.erf(h * jnp.float32(_INV_SQRT2)))
    # tanh approximation: transcendental goes to the (otherwise idle) EUP slot
    # instead of a long erf polynomial on the VALU.
    return jax.nn.gelu(h, approximate=True)


def _vmem_budget_bytes():
    """Usable VMEM budget (bytes), leaving ~20% headroom for compiler scratch."""
    cap = None
    try:
        cap = int(pltpu.get_tpu_info().vmem_capacity_bytes)
    except Exception:
        cap = None
    if cap is None:
        try:
            kind = jax.devices()[0].device_kind.lower()
        except Exception:
            kind = ""
        # v5e / v6e have 128 MiB per TensorCore; v7x only 64 MiB -> conservative default.
        cap = (128 << 20) if ("v5" in kind or "v6" in kind) else (64 << 20)
    return max(32 << 20, int(cap * 0.8))


# --------------------------- kernels ---------------------------------------


def _ff_kernel_resident(x_ref, w1_ref, b1_ref, w2_ref, b2_ref, o_ref, *, exact_gelu):
    # Both weight matrices are VMEM-resident (constant index_map); one grid axis over rows.
    h = jnp.dot(x_ref[...], w1_ref[...], preferred_element_type=jnp.float32)
    h = h + b1_ref[...]                       # bias kept in f32
    h = _gelu_f32(h, exact_gelu)
    # Dropout(p=0.2) is identity at inference time.
    # TODO(synk): training-mode dropout would use pltpu.prng_seed/prng_random_bits.
    y = jnp.dot(h.astype(w2_ref.dtype), w2_ref[...],
                preferred_element_type=jnp.float32)
    y = y + b2_ref[...]
    o_ref[...] = y.astype(o_ref.dtype)


def _ff_kernel_streamed(x_ref, w1_ref, b1_ref, w2_ref, b2_ref, o_ref, acc_ref, *, exact_gelu):
    # 2-D grid (row tiles, hidden tiles); f32 accumulator resident over the hidden axis.
    h_idx = pl.program_id(1)

    @pl.when(h_idx == 0)
    def _():
        acc_ref[...] = jnp.zeros_like(acc_ref)

    h = jnp.dot(x_ref[...], w1_ref[...], preferred_element_type=jnp.float32)
    h = h + b1_ref[...]
    h = _gelu_f32(h, exact_gelu)
    acc_ref[...] += jnp.dot(h.astype(w2_ref.dtype), w2_ref[...],
                            preferred_element_type=jnp.float32)

    @pl.when(h_idx == pl.num_programs(1) - 1)
    def _():
        o_ref[...] = (acc_ref[...] + b2_ref[...]).astype(o_ref.dtype)


# --------------------------- wrapper ----------------------------------------


def make_feed_forward(w1, b1, w2, b2, *, compute_dtype=jnp.bfloat16,
                      exact_gelu=False, tm=None, th=None, weight_resident=None):
    """Build a jitted x -> FeedForward(x).  Weights are padded / cast exactly once."""
    dim, hidden = w1.shape
    assert b1.shape == (hidden,) and w2.shape == (hidden, dim) and b2.shape == (dim,)

    dim_p = _round_up(dim, 128)
    hidden_p = _round_up(hidden, 128)
    it_c = jnp.dtype(compute_dtype).itemsize

    # Pad + cast weights ONCE.  Matmul operands in compute_dtype (bf16 default);
    # biases stay f32 (added once in the f32 epilogue).
    w1_p = jnp.pad(w1, ((0, dim_p - dim), (0, hidden_p - hidden))).astype(compute_dtype)
    w2_p = jnp.pad(w2, ((0, hidden_p - hidden), (0, dim_p - dim))).astype(compute_dtype)
    b1_p = jnp.pad(b1, (0, hidden_p - hidden)).astype(jnp.float32).reshape(1, hidden_p)
    b2_p = jnp.pad(b2, (0, dim_p - dim)).astype(jnp.float32).reshape(1, dim_p)

    budget = _vmem_budget_bytes()

    # Hidden-tile candidates: multiples of 128 dividing hidden_p exactly.
    th_candidates = sorted(
        (d for d in range(128, hidden_p + 1, 128) if hidden_p % d == 0), reverse=True)
    th_target = _round_up(th, 128) if th is not None else (1024 if it_c <= 2 else 512)
    th0 = next(d for d in th_candidates if d <= max(th_target, 128))

    def apply(x):
        assert x.ndim == 3 and x.shape[-1] == dim
        batch, seq, _ = x.shape
        M = batch * seq
        it_o = jnp.dtype(x.dtype).itemsize

        tm0 = _round_up(tm, 128) if tm is not None else (512 if it_c <= 2 else 256)
        tm0 = min(tm0, _round_up(M, 128))

        # -------- static residency / tile selection (Python, trace time) -----
        # Double-buffered weight bytes (Pallas allocates 2 buffers per input).
        w_dbl = 2 * 2 * dim_p * hidden_p * it_c + 2 * (hidden_p + dim_p) * 4

        def resident_usage(tm_):
            return w_dbl + 2 * tm_ * dim_p * (it_c + it_o)

        tm_r = tm0
        if tm is None:
            while tm_r > 128 and resident_usage(tm_r) > budget:
                tm_r //= 2
        resident = weight_resident
        if resident is None:
            resident = resident_usage(tm_r) <= budget

        if resident:
            tm_eff = tm_r
            M_p = _round_up(M, tm_eff)
            n_row = M_p // tm_eff
            x2 = jnp.pad(x.reshape(M, dim),
                         ((0, M_p - M), (0, dim_p - dim))).astype(compute_dtype)

            cost = pl.CostEstimate(
                flops=int(4 * M_p * dim_p * hidden_p),
                transcendentals=int(M_p * hidden_p),
                bytes_accessed=int(M_p * dim_p * (it_c + it_o)
                                   + 2 * dim_p * hidden_p * it_c
                                   + (hidden_p + dim_p) * 4))

            out = pl.pallas_call(
                functools.partial(_ff_kernel_resident, exact_gelu=exact_gelu),
                out_shape=jax.ShapeDtypeStruct((M_p, dim_p), x.dtype),
                grid_spec=pltpu.PrefetchScalarGridSpec(
                    num_scalar_prefetch=0,
                    grid=(n_row,),
                    in_specs=[
                        pl.BlockSpec((tm_eff, dim_p), lambda i: (i, 0)),   # x rows
                        pl.BlockSpec((dim_p, hidden_p), lambda i: (0, 0)),  # W1 (resident)
                        pl.BlockSpec((1, hidden_p), lambda i: (0, 0)),      # b1
                        pl.BlockSpec((hidden_p, dim_p), lambda i: (0, 0)),  # W2 (resident)
                        pl.BlockSpec((1, dim_p), lambda i: (0, 0)),         # b2
                    ],
                    out_specs=pl.BlockSpec((tm_eff, dim_p), lambda i: (i, 0)),
                ),
                compiler_params=pltpu.CompilerParams(
                    dimension_semantics=("parallel",),
                    vmem_limit_bytes=int(budget)),
                cost_estimate=cost,
            )(x2, w1_p, b1_p, w2_p, b2_p)
        else:
            # Streamed weights: tile the hidden (reduction) axis.
            th_eff = th0
            tm_eff = tm0

            def streamed_usage(tm_, th_):
                blk = (tm_ * dim_p * it_c + dim_p * th_ * it_c + th_ * 4
                       + th_ * dim_p * it_c + dim_p * 4 + tm_ * dim_p * it_o)
                return 2 * blk + 4 * tm_ * dim_p   # double-buffered + f32 acc

            while streamed_usage(tm_eff, th_eff) > budget:
                smaller = [d for d in th_candidates if d < th_eff]
                if th is None and smaller:
                    th_eff = smaller[0]
                elif tm is None and tm_eff > 128:
                    tm_eff //= 2
                else:
                    # TODO(synk): tile the dim axis too (3rd grid dim) for very
                    # wide models on v7x's 64 MiB VMEM.
                    break

            M_p = _round_up(M, tm_eff)
            n_row = M_p // tm_eff
            n_hid = hidden_p // th_eff
            x2 = jnp.pad(x.reshape(M, dim),
                         ((0, M_p - M), (0, dim_p - dim))).astype(compute_dtype)

            cost = pl.CostEstimate(
                flops=int(4 * M_p * dim_p * hidden_p),
                transcendentals=int(M_p * hidden_p),
                # W1 / W2 / b1 are re-streamed once per row tile.
                bytes_accessed=int(M_p * dim_p * (it_c + it_o)
                                   + n_row * (2 * dim_p * hidden_p * it_c + hidden_p * 4)
                                   + dim_p * 4))

            out = pl.pallas_call(
                functools.partial(_ff_kernel_streamed, exact_gelu=exact_gelu),
                out_shape=jax.ShapeDtypeStruct((M_p, dim_p), x.dtype),
                grid_spec=pltpu.PrefetchScalarGridSpec(
                    num_scalar_prefetch=0,
                    grid=(n_row, n_hid),
                    in_specs=[
                        pl.BlockSpec((tm_eff, dim_p), lambda i, h: (i, 0)),  # x rows
                        pl.BlockSpec((dim_p, th_eff), lambda i, h: (0, h)),  # W1 tile
                        pl.BlockSpec((1, th_eff), lambda i, h: (0, h)),      # b1 tile
                        pl.BlockSpec((th_eff, dim_p), lambda i, h: (h, 0)),  # W2 tile
                        pl.BlockSpec((1, dim_p), lambda i, h: (0, 0)),       # b2
                    ],
                    out_specs=pl.BlockSpec((tm_eff, dim_p), lambda i, h: (i, 0)),
                    scratch_shapes=[pltpu.VMEM((tm_eff, dim_p), jnp.float32)],
                ),
                compiler_params=pltpu.CompilerParams(
                    dimension_semantics=("parallel", "arbitrary"),
                    vmem_limit_bytes=int(budget)),
                cost_estimate=cost,
            )(x2, w1_p, b1_p, w2_p, b2_p)

        return out[:M, :dim].reshape(batch, seq, dim)

    return jax.jit(apply)


# --------------------------- reference & test --------------------------------


def _ref_feed_forward(x, w1, b1, w2, b2):
    xf = x.astype(jnp.float32)
    h = xf @ w1.astype(jnp.float32) + b1.astype(jnp.float32)
    h = 0.5 * h * (1.0 + lax.erf(h * jnp.float32(_INV_SQRT2)))
    y = h @ w2.astype(jnp.float32) + b2.astype(jnp.float32)
    return y.astype(x.dtype)


def _init_params(key, dim, hidden):
    k1, k2, k3, k4 = jax.random.split(key, 4)
    lim1 = 1.0 / math.sqrt(dim)
    lim2 = 1.0 / math.sqrt(hidden)
    w1 = jax.random.uniform(k1, (dim, hidden), jnp.float32, -lim1, lim1)
    b1 = jax.random.uniform(k2, (hidden,), jnp.float32, -lim1, lim1)
    w2 = jax.random.uniform(k3, (hidden, dim), jnp.float32, -lim2, lim2)
    b2 = jax.random.uniform(k4, (dim,), jnp.float32, -lim2, lim2)
    return w1, b1, w2, b2


if __name__ == "__main__":
    key = jax.random.PRNGKey(0)
    kx1, kp1, kx2, kp2 = jax.random.split(key, 4)

    # ---- Case 1: small mixer-style FeedForward (dim=16, hidden=32) ----
    batch, seq, dim, hidden = 2, 8, 16, 32
    x = jax.random.normal(kx1, (batch, seq, dim), jnp.float32)
    w1, b1, w2, b2 = _init_params(kp1, dim, hidden)
    ref = _ref_feed_forward(x, w1, b1, w2, b2)

    # (a) default fast path: bf16 MXU operands, VMEM-resident weights,
    #     tanh-approx GELU.  Loose tolerance because of bf16 operands.
    out_fast = jax.block_until_ready(make_feed_forward(w1, b1, w2, b2)(x))
    assert out_fast.shape == (batch, seq, dim)
    assert jnp.allclose(out_fast, ref, atol=5e-2, rtol=5e-2), "bf16 fast path mismatch"

    # (b) exact path: f32 operands + exact erf GELU — validates padding /
    #     residency logic against the reference.
    out_exact = jax.block_until_ready(
        make_feed_forward(w1, b1, w2, b2,
                          compute_dtype=jnp.float32, exact_gelu=True)(x))
    assert jnp.allclose(out_exact, ref, atol=1e-5, rtol=1e-5), "f32 resident mismatch"

    # ---- Case 2: force the streamed-weight variant with several hidden steps ----
    dim2, hidden2 = 128, 384
    x2 = jax.random.normal(kx2, (batch, seq, dim2), jnp.float32)
    w1b, b1b, w2b, b2b = _init_params(kp2, dim2, hidden2)
    ref2 = _ref_feed_forward(x2, w1b, b1b, w2b, b2b)
    out_streamed = jax.block_until_ready(
        make_feed_forward(w1b, b1b, w2b, b2b, compute_dtype=jnp.float32,
                          exact_gelu=True, weight_resident=False, th=128)(x2))
    assert out_streamed.shape == (batch, seq, dim2)
    assert jnp.allclose(out_streamed, ref2, atol=1e-4, rtol=1e-4), "streamed path mismatch"

    print("KERNEL_OK")
</pallas_src>

<mosaic_0001>
module attributes {stable_mosaic.version = 11 : i64} {
  func.func @_ff_kernel_resident(%arg0: i32, %arg1: memref<128x128xbf16, #tpu.memory_space<vmem>>, %arg2: memref<128x128xbf16, #tpu.memory_space<vmem>>, %arg3: memref<1x128xf32, #tpu.memory_space<vmem>>, %arg4: memref<128x128xbf16, #tpu.memory_space<vmem>>, %arg5: memref<1x128xf32, #tpu.memory_space<vmem>>, %arg6: memref<128x128xf32, #tpu.memory_space<vmem>>) attributes {dimension_semantics = [#tpu.dimension_semantics<parallel>], iteration_bounds = array<i64: 1>, scalar_prefetch = 0 : i64, scratch_operands = 0 : i64, tpu.core_type = #tpu.core_type<tc>, window_params = [{transform_indices = @transform_0, window_bounds = array<i64: 128, 128>}, {pipeline_mode = #tpu.pipeline_mode<synchronous>, transform_indices = @transform_1, window_bounds = array<i64: 128, 128>}, {pipeline_mode = #tpu.pipeline_mode<synchronous>, transform_indices = @transform_2, window_bounds = array<i64: 1, 128>}, {pipeline_mode = #tpu.pipeline_mode<synchronous>, transform_indices = @transform_3, window_bounds = array<i64: 128, 128>}, {pipeline_mode = #tpu.pipeline_mode<synchronous>, transform_indices = @transform_4, window_bounds = array<i64: 1, 128>}, {transform_indices = @transform_5, window_bounds = array<i64: 128, 128>}]} {
    %c0 = arith.constant 0 : index
    %c0_0 = arith.constant 0 : index
    %0 = vector.load %arg1[%c0, %c0_0] : memref<128x128xbf16, #tpu.memory_space<vmem>>, vector<128x128xbf16>
    %c0_1 = arith.constant 0 : index
    %c0_2 = arith.constant 0 : index
    %1 = vector.load %arg2[%c0_1, %c0_2] : memref<128x128xbf16, #tpu.memory_space<vmem>>, vector<128x128xbf16>
    %cst = arith.constant dense<0.000000e+00> : vector<128x128xf32>
    %2 = tpu.matmul %0, %1, %cst {dimension_numbers = #tpu.dot_dimension_numbers<[1], [0], [0], [1], [0, 0, 1, 1], [], []>} : vector<128x128xbf16>, vector<128x128xbf16>, vector<128x128xf32> -> vector<128x128xf32>
    %c0_3 = arith.constant 0 : index
    %c0_4 = arith.constant 0 : index
    %3 = vector.load %arg3[%c0_3, %c0_4] : memref<1x128xf32, #tpu.memory_space<vmem>>, vector<1x128xf32>
    %4 = vector.broadcast %3 : vector<1x128xf32> to vector<128x128xf32>
    %5 = arith.addf %2, %4 : vector<128x128xf32>
    %6 = arith.mulf %5, %5 : vector<128x128xf32>
    %7 = arith.mulf %5, %6 : vector<128x128xf32>
    %cst_5 = arith.constant 4.471500e-02 : f32
    %8 = vector.broadcast %cst_5 : f32 to vector<128x128xf32>
    %9 = arith.mulf %8, %7 : vector<128x128xf32>
    %10 = arith.addf %5, %9 : vector<128x128xf32>
    %cst_6 = arith.constant 0.797884583 : f32
    %11 = vector.broadcast %cst_6 : f32 to vector<128x128xf32>
    %12 = arith.mulf %11, %10 : vector<128x128xf32>
    %13 = math.tanh %12 : vector<128x128xf32>
    %cst_7 = arith.constant 1.000000e+00 : f32
    %14 = vector.broadcast %cst_7 : f32 to vector<128x128xf32>
    %15 = arith.addf %14, %13 : vector<128x128xf32>
    %cst_8 = arith.constant 5.000000e-01 : f32
    %16 = vector.broadcast %cst_8 : f32 to vector<128x128xf32>
    %17 = arith.mulf %16, %15 : vector<128x128xf32>
    %18 = arith.mulf %5, %17 : vector<128x128xf32>
    %19 = arith.truncf %18 : vector<128x128xf32> to vector<128x128xbf16>
    %c0_9 = arith.constant 0 : index
    %c0_10 = arith.constant 0 : index
    %20 = vector.load %arg4[%c0_9, %c0_10] : memref<128x128xbf16, #tpu.memory_space<vmem>>, vector<128x128xbf16>
    %cst_11 = arith.constant dense<0.000000e+00> : vector<128x128xf32>
    %21 = tpu.matmul %19, %20, %cst_11 {dimension_numbers = #tpu.dot_dimension_numbers<[1], [0], [0], [1], [0, 0, 1, 1], [], []>} : vector<128x128xbf16>, vector<128x128xbf16>, vector<128x128xf32> -> vector<128x128xf32>
    %c0_12 = arith.constant 0 : index
    %c0_13 = arith.constant 0 : index
    %22 = vector.load %arg5[%c0_12, %c0_13] : memref<1x128xf32, #tpu.memory_space<vmem>>, vector<1x128xf32>
    %23 = vector.broadcast %22 : vector<1x128xf32> to vector<128x128xf32>
    %24 = arith.addf %21, %23 : vector<128x128xf32>
    %c0_14 = arith.constant 0 : index
    %c0_15 = arith.constant 0 : index
    %25 = vector.load %arg6[%c0_14, %c0_15] : memref<128x128xf32, #tpu.memory_space<vmem>>, vector<128x128xf32>
    tpu.vector_store %arg6[%c0_14, %c0_15], %24 {strides = array<i32>} : memref<128x128xf32, #tpu.memory_space<vmem>>, vector<128x128xf32>,
    return
  }
  func.func @transform_0(%arg0: i32) -> (i32, i32) {
    %c0_i32 = arith.constant 0 : i32
    %c0_i32_0 = arith.constant 0 : i32
    return %arg0, %c0_i32 : i32, i32
  }
  func.func @transform_1(%arg0: i32) -> (i32, i32) {
    %c0_i32 = arith.constant 0 : i32
    %c0_i32_0 = arith.constant 0 : i32
    %c0_i32_1 = arith.constant 0 : i32
    return %c0_i32, %c0_i32_0 : i32, i32
  }
  func.func @transform_2(%arg0: i32) -> (i32, i32) {
    %c0_i32 = arith.constant 0 : i32
    %c0_i32_0 = arith.constant 0 : i32
    %c0_i32_1 = arith.constant 0 : i32
    return %c0_i32, %c0_i32_0 : i32, i32
  }
  func.func @transform_3(%arg0: i32) -> (i32, i32) {
    %c0_i32 = arith.constant 0 : i32
    %c0_i32_0 = arith.constant 0 : i32
    %c0_i32_1 = arith.constant 0 : i32
    return %c0_i32, %c0_i32_0 : i32, i32
  }
  func.func @transform_4(%arg0: i32) -> (i32, i32) {
    %c0_i32 = arith.constant 0 : i32
    %c0_i32_0 = arith.constant 0 : i32
    %c0_i32_1 = arith.constant 0 : i32
    return %c0_i32, %c0_i32_0 : i32, i32
  }
  func.func @transform_5(%arg0: i32) -> (i32, i32) {
    %c0_i32 = arith.constant 0 : i32
    %c0_i32_0 = arith.constant 0 : i32
    return %arg0, %c0_i32 : i32, i32
  }
}

</mosaic_0001>

<llo_original>
// kernel: apply.1
$region0: #{apply.1}
  #allocation0 [shape = 'u32[]', space=smem, size = 0x4, offset = 0x4, fixed_abs, tag = 'smem constant byte address 0x4 - core index']
  #allocation1 [shape = 'u32[72,128]{1,0:T(1,128)}', space=vmem, size = 0x9000, scoped, tag = 'internal scratch']
  %s0 = inlined_call_operand.vmem [shape: bf16[128,128], index: 0, kind: input, shape index: {}]
  %s1 = inlined_call_operand.hbm [shape: bf16[128,128], index: 1, kind: input, shape index: {}]
  %s2 = inlined_call_operand.vmem [shape: f32[1,128], index: 2, kind: input, shape index: {}]
  %s3 = inlined_call_operand.vmem [shape: bf16[128,128], index: 3, kind: input, shape index: {}]
  %s4 = inlined_call_operand.vmem [shape: f32[1,128], index: 4, kind: input, shape index: {}]
  %s5 = inlined_call_operand.vmem [shape: f32[128,128], index: 5, kind: output, shape index: {}]
  %s6 = sld [smem:[#allocation0]]
  $region34: #{apply.1} parent=0
    _
  %s8 = ssub.s32 1, %s6
  %s9 = scalar_select 0, %s8, %s6
  $region1: #{apply.1} parent=0
    #allocation2 [shape = 'u8[32768]{0}', space=vmem, size = 0x8000, scoped, tag = 'input window, operand 1, single buffered']
    #allocation3 [shape = 's32[1]{0}', space=sflag, size = 0x4, scoped, tag = 'scoped memory for apply.1']
    %10 = vsyncpa [#allocation3], 0
    // Predicated region
    $region2: #{apply.1} parent=1 // pred_check
      _
    $region3: #{apply.1} parent=1 // pred_check_branch
      %12 = sbr.rel (0) target = $region5
    $region4: #{apply.1} parent=1 // pred_region
      _
    $region5: #{apply.1} parent=1 // pred_fallthru
      _
    // Predicated region
    $region6: #{apply.1} parent=1 // pred_check
      _
    $region7: #{apply.1} parent=1 // pred_check_branch
      %14 = sbr.rel (0) target = $region9
    $region8: #{apply.1} parent=1 // pred_region
      %16 = vsyncadd [#allocation3], 0
      %s17 = sshll.u32 %s1, 4
      %s18 = int_to_ptr.hbm [resolvable:$true] %s17
      %s19 = sshll.u32 [#allocation2], 4
      %s20 = int_to_ptr.vmem [resolvable:$true] %s19
      %25 = dma.hbm_to_vmem [thread:$0]  %s18, 1024, %s20, [#allocation3], 64, 64, 4
    $region9: #{apply.1} parent=1 // pred_fallthru
      _
    // Predicated region
    $region10: #{apply.1} parent=1 // pred_check
      _
    $region11: #{apply.1} parent=1 // pred_check_branch
      %27 = sbr.rel (0) target = $region13
    $region12: #{apply.1} parent=1 // pred_region
      _
    $region13: #{apply.1} parent=1 // pred_fallthru
      _
    // Predicated region
    $region14: #{apply.1} parent=1 // pred_check
      _
    $region15: #{apply.1} parent=1 // pred_check_branch
      %29 = sbr.rel (0) target = $region17
    $region16: #{apply.1} parent=1 // pred_region
      _
    $region17: #{apply.1} parent=1 // pred_fallthru
      _
    // Predicated region
    $region18: #{apply.1} parent=1 // pred_check
      _
    $region19: #{apply.1} parent=1 // pred_check_branch
      %31 = sbr.rel (0) target = $region21
    $region20: #{apply.1} parent=1 // pred_region
      _
    $region21: #{apply.1} parent=1 // pred_fallthru
      _
    // Predicated region
    $region22: #{apply.1} parent=1 // pred_check
      _
    $region23: #{apply.1} parent=1 // pred_check_branch
      %33 = sbr.rel (0) target = $region25
    $region24: #{apply.1} parent=1 // pred_region
      %35 = dma.done [#allocation3], 1024
    $region25: #{apply.1} parent=1 // pred_fallthru
      _
    %v36 = vld [vmem:[%s0] sm:$0xf]
    %v37 = vld [vmem:[%s0 + $0x4] sm:$0xf]
    %v38 = vld [vmem:[%s0 + $0x8] sm:$0xf]
    %v39 = vld [vmem:[%s0 + $0xc] sm:$0xf]
    %v40 = vld [vmem:[%s0 + $0x10] sm:$0xf]
    %v41 = vld [vmem:[%s0 + $0x14] sm:$0xf]
    %v42 = vld [vmem:[%s0 + $0x18] sm:$0xf]
    %v43 = vld [vmem:[%s0 + $0x1c] sm:$0xf]
    %v44 = vld [vmem:[%s0 + $0x20] sm:$0xf]
    %v45 = vld [vmem:[%s0 + $0x24] sm:$0xf]
    %v46 = vld [vmem:[%s0 + $0x28] sm:$0xf]
    %v47 = vld [vmem:[%s0 + $0x2c] sm:$0xf]
    %v48 = vld [vmem:[%s0 + $0x30] sm:$0xf]
    %v49 = vld [vmem:[%s0 + $0x34] sm:$0xf]
    %v50 = vld [vmem:[%s0 + $0x38] sm:$0xf]
    %v51 = vld [vmem:[%s0 + $0x3c] sm:$0xf]
    %v52 = vld [vmem:[#allocation2] sm:$0xf]
    %v53 = vld [vmem:[#allocation2 + $0x4] sm:$0xf]
    %v54 = vld [vmem:[#allocation2 + $0x8] sm:$0xf]
    %v55 = vld [vmem:[#allocation2 + $0xc] sm:$0xf]
    %v56 = vld [vmem:[#allocation2 + $0x10] sm:$0xf]
    %v57 = vld [vmem:[#allocation2 + $0x14] sm:$0xf]
    %v58 = vld [vmem:[#allocation2 + $0x18] sm:$0xf]
    %v59 = vld [vmem:[#allocation2 + $0x1c] sm:$0xf]
    %v60 = vld [vmem:[#allocation2 + $0x20] sm:$0xf]
    %v61 = vld [vmem:[#allocation2 + $0x24] sm:$0xf]
    %v62 = vld [vmem:[#allocation2 + $0x28] sm:$0xf]
    %v63 = vld [vmem:[#allocation2 + $0x2c] sm:$0xf]
    %v64 = vld [vmem:[#allocation2 + $0x30] sm:$0xf]
    %v65 = vld [vmem:[#allocation2 + $0x34] sm:$0xf]
    %v66 = vld [vmem:[#allocation2 + $0x38] sm:$0xf]
    %v67 = vld [vmem:[#allocation2 + $0x3c] sm:$0xf]
    %v68 = vld [vmem:[%s2] sm:$0x1]
    %v70 = vperm.slane %v68, 0
    %v88 = vunpack.c.l.b16 %v36
    %v89 = vunpack.c.l.b16 %v37
    %v90 = vunpack.c.l.b16 %v38
    %v91 = vunpack.c.l.b16 %v39
    %v92 = vunpack.c.l.b16 %v40
    %v93 = vunpack.c.l.b16 %v41
    %v94 = vunpack.c.l.b16 %v42
    %v95 = vunpack.c.l.b16 %v43
    %v96 = vunpack.c.l.b16 %v44
    %v97 = vunpack.c.l.b16 %v45
    %v98 = vunpack.c.l.b16 %v46
    %v99 = vunpack.c.l.b16 %v47
    %v100 = vunpack.c.l.b16 %v48
    %v101 = vunpack.c.l.b16 %v49
    %v102 = vunpack.c.l.b16 %v50
    %v103 = vunpack.c.l.b16 %v51
    %v104 = vpack.c.b16 %v89, %v88
    %v105 = vpack.c.b16 %v91, %v90
    %v106 = vpack.c.b16 %v93, %v92
    %v107 = vpack.c.b16 %v95, %v94
    %v108 = vpack.c.b16 %v97, %v96
    %v109 = vpack.c.b16 %v99, %v98
    %v110 = vpack.c.b16 %v101, %v100
    %v111 = vpack.c.b16 %v103, %v102
    %v136 = vunpack.c.l.b16 %v52
    %v137 = vunpack.c.l.b16 %v53
    %v138 = vunpack.c.l.b16 %v54
    %v139 = vunpack.c.l.b16 %v55
    %v140 = vunpack.c.l.b16 %v56
    %v141 = vunpack.c.l.b16 %v57
    %v142 = vunpack.c.l.b16 %v58
    %v143 = vunpack.c.l.b16 %v59
    %v144 = vunpack.c.l.b16 %v60
    %v145 = vunpack.c.l.b16 %v61
    %v146 = vunpack.c.l.b16 %v62
    %v147 = vunpack.c.l.b16 %v63
    %v148 = vunpack.c.l.b16 %v64
    %v149 = vunpack.c.l.b16 %v65
    %v150 = vunpack.c.l.b16 %v66
    %v151 = vunpack.c.l.b16 %v67
    %v152 = vpack.c.b16 %v137, %v136
    %v153 = vpack.c.b16 %v139, %v138
    %v154 = vpack.c.b16 %v141, %v140
    %v155 = vpack.c.b16 %v143, %v142
    %v156 = vpack.c.b16 %v145, %v144
    %v157 = vpack.c.b16 %v147, %v146
    %v158 = vpack.c.b16 %v149, %v148
    %v159 = vpack.c.b16 %v151, %v150
    %168 = vmatpush.bf16.msra.mxu0 %v159
    %169 = vmatpush.bf16.msra.mxu0 %v158
    %170 = vmatpush.bf16.msra.mxu0 %v157
    %171 = vmatpush.bf16.msra.mxu0 %v156
    %172 = vmatpush.bf16.msra.mxu0 %v155
    %173 = vmatpush.bf16.msra.mxu0 %v154
    %174 = vmatpush.bf16.msra.mxu0 %v153
    %175 = vmatpush.bf16.msra.mxu0 %v152
    %176 = vmatmul.bf16.gmra.mxu0 %v104
    %v177 = vpop.f32.mrf.mxu0
    %v178 = vadd.f32 %v70, %v177
    %v179 = vpop.f32.mrf.mxu0
    %v180 = vadd.f32 %v70, %v179
    %181 = vmatmul.bf16.gmra.mxu0 %v105
    %v182 = vpop.f32.mrf.mxu0
    %v183 = vadd.f32 %v70, %v182
    %v184 = vpop.f32.mrf.mxu0
    %v185 = vadd.f32 %v70, %v184
    %186 = vmatmul.bf16.gmra.mxu0 %v106
    %v187 = vpop.f32.mrf.mxu0
    %v188 = vadd.f32 %v70, %v187
    %v189 = vpop.f32.mrf.mxu0
    %v190 = vadd.f32 %v70, %v189
    %191 = vmatmul.bf16.gmra.mxu0 %v107
    %v192 = vpop.f32.mrf.mxu0
    %v193 = vadd.f32 %v70, %v192
    %v194 = vpop.f32.mrf.mxu0
    %v195 = vadd.f32 %v70, %v194
    %196 = vmatmul.bf16.gmra.mxu0 %v108
    %v197 = vpop.f32.mrf.mxu0
    %v198 = vadd.f32 %v70, %v197
    %v199 = vpop.f32.mrf.mxu0
    %v200 = vadd.f32 %v70, %v199
    %201 = vmatmul.bf16.gmra.mxu0 %v109
    %v202 = vpop.f32.mrf.mxu0
    %v203 = vadd.f32 %v70, %v202
    %v204 = vpop.f32.mrf.mxu0
    %v205 = vadd.f32 %v70, %v204
    %206 = vmatmul.bf16.gmra.mxu0 %v110
    %v207 = vpop.f32.mrf.mxu0
    %v208 = vadd.f32 %v70, %v207
    %v209 = vpop.f32.mrf.mxu0
    %v210 = vadd.f32 %v70, %v209
    %211 = vmatmul.bf16.gmra.mxu0 %v111
    %v212 = vpop.f32.mrf.mxu0
    %v213 = vadd.f32 %v70, %v212
    %v214 = vpop.f32.mrf.mxu0
    %v215 = vadd.f32 %v70, %v214
    %216 = vdwg.mxu0
    %v217 = vmul.f32 %v178, %v178
    %v218 = vmul.f32 %v180, %v180
    %v219 = vmul.f32 %v183, %v183
    %v220 = vmul.f32 %v185, %v185
    %v221 = vmul.f32 %v188, %v188
    %v222 = vmul.f32 %v190, %v190
    %v223 = vmul.f32 %v193, %v193
    %v224 = vmul.f32 %v195, %v195
    %v225 = vmul.f32 %v198, %v198
    %v226 = vmul.f32 %v200, %v200
    %v227 = vmul.f32 %v203, %v203
    %v228 = vmul.f32 %v205, %v205
    %v229 = vmul.f32 %v208, %v208
    %v230 = vmul.f32 %v210, %v210
    %v231 = vmul.f32 %v213, %v213
    %v232 = vmul.f32 %v215, %v215
    %v233 = vmul.f32 %v178, %v217
    %v234 = vmul.f32 %v180, %v218
    %v235 = vmul.f32 %v183, %v219
    %v236 = vmul.f32 %v185, %v220
    %v237 = vmul.f32 %v188, %v221
    %v238 = vmul.f32 %v190, %v222
    %v239 = vmul.f32 %v193, %v223
    %v240 = vmul.f32 %v195, %v224
    %v241 = vmul.f32 %v198, %v225
    %v242 = vmul.f32 %v200, %v226
    %v243 = vmul.f32 %v203, %v227
    %v244 = vmul.f32 %v205, %v228
    %v245 = vmul.f32 %v208, %v229
    %v246 = vmul.f32 %v210, %v230
    %v247 = vmul.f32 %v213, %v231
    %v248 = vmul.f32 %v215, %v232
    %v249 = vmul.f32 %v233, 0.044715
    %v250 = vmul.f32 %v234, 0.044715
    %v251 = vmul.f32 %v235, 0.044715
    %v252 = vmul.f32 %v236, 0.044715
    %v253 = vmul.f32 %v237, 0.044715
    %v254 = vmul.f32 %v238, 0.044715
    %v255 = vmul.f32 %v239, 0.044715
    %v256 = vmul.f32 %v240, 0.044715
    %v257 = vmul.f32 %v241, 0.044715
    %v258 = vmul.f32 %v242, 0.044715
    %v259 = vmul.f32 %v243, 0.044715
    %v260 = vmul.f32 %v244, 0.044715
    %v261 = vmul.f32 %v245, 0.044715
    %v262 = vmul.f32 %v246, 0.044715
    %v263 = vmul.f32 %v247, 0.044715
    %v264 = vmul.f32 %v248, 0.044715
    %v265 = vadd.f32 %v178, %v249
    %v266 = vadd.f32 %v180, %v250
    %v267 = vadd.f32 %v183, %v251
    %v268 = vadd.f32 %v185, %v252
    %v269 = vadd.f32 %v188, %v253
    %v270 = vadd.f32 %v190, %v254
    %v271 = vadd.f32 %v193, %v255
    %v272 = vadd.f32 %v195, %v256
    %v273 = vadd.f32 %v198, %v257
    %v274 = vadd.f32 %v200, %v258
    %v275 = vadd.f32 %v203, %v259
    %v276 = vadd.f32 %v205, %v260
    %v277 = vadd.f32 %v208, %v261
    %v278 = vadd.f32 %v210, %v262
    %v279 = vadd.f32 %v213, %v263
    %v280 = vadd.f32 %v215, %v264
    %v281 = vmul.f32 %v265, 0.7978846
    %v282 = vmul.f32 %v266, 0.7978846
    %v283 = vmul.f32 %v267, 0.7978846
    %v284 = vmul.f32 %v268, 0.7978846
    %v285 = vmul.f32 %v269, 0.7978846
    %v286 = vmul.f32 %v270, 0.7978846
    %v287 = vmul.f32 %v271, 0.7978846
    %v288 = vmul.f32 %v272, 0.7978846
    %v289 = vmul.f32 %v273, 0.7978846
    %v290 = vmul.f32 %v274, 0.7978846
    %v291 = vmul.f32 %v275, 0.7978846
    %v292 = vmul.f32 %v276, 0.7978846
    %v293 = vmul.f32 %v277, 0.7978846
    %v294 = vmul.f32 %v278, 0.7978846
    %v295 = vmul.f32 %v279, 0.7978846
    %v296 = vmul.f32 %v280, 0.7978846
    %v297 = vtanh.pop %v281
    %v298 = vtanh.pop %v282
    %v299 = vtanh.pop %v283
    %v300 = vtanh.pop %v284
    %v301 = vtanh.pop %v285
    %v302 = vtanh.pop %v286
    %v303 = vtanh.pop %v287
    %v304 = vtanh.pop %v288
    %v305 = vtanh.pop %v289
    %v306 = vtanh.pop %v290
    %v307 = vtanh.pop %v291
    %v308 = vtanh.pop %v292
    %v309 = vtanh.pop %v293
    %v310 = vtanh.pop %v294
    %v311 = vtanh.pop %v295
    %v312 = vtanh.pop %v296
    %v313 = vadd.f32 %v297, 1.0
    %v314 = vadd.f32 %v298, 1.0
    %v315 = vadd.f32 %v299, 1.0
    %v316 = vadd.f32 %v300, 1.0
    %v317 = vadd.f32 %v301, 1.0
    %v318 = vadd.f32 %v302, 1.0
    %v319 = vadd.f32 %v303, 1.0
    %v320 = vadd.f32 %v304, 1.0
    %v321 = vadd.f32 %v305, 1.0
    %v322 = vadd.f32 %v306, 1.0
    %v323 = vadd.f32 %v307, 1.0
    %v324 = vadd.f32 %v308, 1.0
    %v325 = vadd.f32 %v309, 1.0
    %v326 = vadd.f32 %v310, 1.0
    %v327 = vadd.f32 %v311, 1.0
    %v328 = vadd.f32 %v312, 1.0
    %v329 = vmul.f32 %v313, 0.5
    %v330 = vmul.f32 %v314, 0.5
    %v331 = vmul.f32 %v315, 0.5
    %v332 = vmul.f32 %v316, 0.5
    %v333 = vmul.f32 %v317, 0.5
    %v334 = vmul.f32 %v318, 0.5
    %v335 = vmul.f32 %v319, 0.5
    %v336 = vmul.f32 %v320, 0.5
    %v337 = vmul.f32 %v321, 0.5
    %v338 = vmul.f32 %v322, 0.5
    %v339 = vmul.f32 %v323, 0.5
    %v340 = vmul.f32 %v324, 0.5
    %v341 = vmul.f32 %v325, 0.5
    %v342 = vmul.f32 %v326, 0.5
    %v343 = vmul.f32 %v327, 0.5
    %v344 = vmul.f32 %v328, 0.5
    %v345 = vmul.f32 %v178, %v329
    %v346 = vmul.f32 %v180, %v330
    %v347 = vmul.f32 %v183, %v331
    %v348 = vmul.f32 %v185, %v332
    %v349 = vmul.f32 %v188, %v333
    %v350 = vmul.f32 %v190, %v334
    %v351 = vmul.f32 %v193, %v335
    %v352 = vmul.f32 %v195, %v336
    %v353 = vmul.f32 %v198, %v337
    %v354 = vmul.f32 %v200, %v338
    %v355 = vmul.f32 %v203, %v339
    %v356 = vmul.f32 %v205, %v340
    %v357 = vmul.f32 %v208, %v341
    %v358 = vmul.f32 %v210, %v342
    %v359 = vmul.f32 %v213, %v343
    %v360 = vmul.f32 %v215, %v344
    %v361 = vpack.c.bf16 %v346, %v345
    %v362 = vpack.c.bf16 %v348, %v347
    %v363 = vpack.c.bf16 %v350, %v349
    %v364 = vpack.c.bf16 %v352, %v351
    %v365 = vpack.c.bf16 %v354, %v353
    %v366 = vpack.c.bf16 %v356, %v355
    %v367 = vpack.c.bf16 %v358, %v357
    %v368 = vpack.c.bf16 %v360, %v359
    %v369 = vld [vmem:[%s3] sm:$0xf]
    %v370 = vld [vmem:[%s3 + $0x4] sm:$0xf]
    %v371 = vld [vmem:[%s3 + $0x8] sm:$0xf]
    %v372 = vld [vmem:[%s3 + $0xc] sm:$0xf]
    %v373 = vld [vmem:[%s3 + $0x10] sm:$0xf]
    %v374 = vld [vmem:[%s3 + $0x14] sm:$0xf]
    %v375 = vld [vmem:[%s3 + $0x18] sm:$0xf]
    %v376 = vld [vmem:[%s3 + $0x1c] sm:$0xf]
    %v377 = vld [vmem:[%s3 + $0x20] sm:$0xf]
    %v378 = vld [vmem:[%s3 + $0x24] sm:$0xf]
    %v379 = vld [vmem:[%s3 + $0x28] sm:$0xf]
    %v380 = vld [vmem:[%s3 + $0x2c] sm:$0xf]
    %v381 = vld [vmem:[%s3 + $0x30] sm:$0xf]
    %v382 = vld [vmem:[%s3 + $0x34] sm:$0xf]
    %v383 = vld [vmem:[%s3 + $0x38] sm:$0xf]
    %v384 = vld [vmem:[%s3 + $0x3c] sm:$0xf]
    %v385 = vld [vmem:[%s4] sm:$0x1]
    %v387 = vperm.slane %v385, 0
    %v405 = vunpack.c.l.b16 %v369
    %v406 = vunpack.c.l.b16 %v370
    %v407 = vunpack.c.l.b16 %v371
    %v408 = vunpack.c.l.b16 %v372
    %v409 = vunpack.c.l.b16 %v373
    %v410 = vunpack.c.l.b16 %v374
    %v411 = vunpack.c.l.b16 %v375
    %v412 = vunpack.c.l.b16 %v376
    %v413 = vunpack.c.l.b16 %v377
    %v414 = vunpack.c.l.b16 %v378
    %v415 = vunpack.c.l.b16 %v379
    %v416 = vunpack.c.l.b16 %v380
    %v417 = vunpack.c.l.b16 %v381
    %v418 = vunpack.c.l.b16 %v382
    %v419 = vunpack.c.l.b16 %v383
    %v420 = vunpack.c.l.b16 %v384
    %v421 = vpack.c.b16 %v406, %v405
    %v422 = vpack.c.b16 %v408, %v407
    %v423 = vpack.c.b16 %v410, %v409
    %v424 = vpack.c.b16 %v412, %v411
    %v425 = vpack.c.b16 %v414, %v413
    %v426 = vpack.c.b16 %v416, %v415
    %v427 = vpack.c.b16 %v418, %v417
    %v428 = vpack.c.b16 %v420, %v419
    %437 = vmatpush.bf16.msra.mxu0 %v428
    %438 = vmatpush.bf16.msra.mxu0 %v427
    %439 = vmatpush.bf16.msra.mxu0 %v426
    %440 = vmatpush.bf16.msra.mxu0 %v425
    %441 = vmatpush.bf16.msra.mxu0 %v424
    %442 = vmatpush.bf16.msra.mxu0 %v423
    %443 = vmatpush.bf16.msra.mxu0 %v422
    %444 = vmatpush.bf16.msra.mxu0 %v421
    %445 = vmatmul.bf16.gmra.mxu0 %v361
    %v446 = vpop.f32.mrf.mxu0
    %v447 = vadd.f32 %v387, %v446
    %v448 = vpop.f32.mrf.mxu0
    %v449 = vadd.f32 %v387, %v448
    %450 = vmatmul.bf16.gmra.mxu0 %v362
    %v451 = vpop.f32.mrf.mxu0
    %v452 = vadd.f32 %v387, %v451
    %v453 = vpop.f32.mrf.mxu0
    %v454 = vadd.f32 %v387, %v453
    %455 = vmatmul.bf16.gmra.mxu0 %v363
    %v456 = vpop.f32.mrf.mxu0
    %v457 = vadd.f32 %v387, %v456
    %v458 = vpop.f32.mrf.mxu0
    %v459 = vadd.f32 %v387, %v458
    %460 = vmatmul.bf16.gmra.mxu0 %v364
    %v461 = vpop.f32.mrf.mxu0
    %v462 = vadd.f32 %v387, %v461
    %v463 = vpop.f32.mrf.mxu0
    %v464 = vadd.f32 %v387, %v463
    %465 = vmatmul.bf16.gmra.mxu0 %v365
    %v466 = vpop.f32.mrf.mxu0
    %v467 = vadd.f32 %v387, %v466
    %v468 = vpop.f32.mrf.mxu0
    %v469 = vadd.f32 %v387, %v468
    %470 = vmatmul.bf16.gmra.mxu0 %v366
    %v471 = vpop.f32.mrf.mxu0
    %v472 = vadd.f32 %v387, %v471
    %v473 = vpop.f32.mrf.mxu0
    %v474 = vadd.f32 %v387, %v473
    %475 = vmatmul.bf16.gmra.mxu0 %v367
    %v476 = vpop.f32.mrf.mxu0
    %v477 = vadd.f32 %v387, %v476
    %v478 = vpop.f32.mrf.mxu0
    %v479 = vadd.f32 %v387, %v478
    %480 = vmatmul.bf16.gmra.mxu0 %v368
    %v481 = vpop.f32.mrf.mxu0
    %v482 = vadd.f32 %v387, %v481
    %v483 = vpop.f32.mrf.mxu0
    %v484 = vadd.f32 %v387, %v483
    %485 = vdwg.mxu0
    %486 = vst [vmem:[%s5] sm:$0xff] %v447
    %487 = vst [vmem:[%s5 + $0x8] sm:$0xff] %v449
    %488 = vst [vmem:[%s5 + $0x10] sm:$0xff] %v452
    %489 = vst [vmem:[%s5 + $0x18] sm:$0xff] %v454
    %490 = vst [vmem:[%s5 + $0x20] sm:$0xff] %v457
    %491 = vst [vmem:[%s5 + $0x28] sm:$0xff] %v459
    %492 = vst [vmem:[%s5 + $0x30] sm:$0xff] %v462
    %493 = vst [vmem:[%s5 + $0x38] sm:$0xff] %v464
    %494 = vst [vmem:[%s5 + $0x40] sm:$0xff] %v467
    %495 = vst [vmem:[%s5 + $0x48] sm:$0xff] %v469
    %496 = vst [vmem:[%s5 + $0x50] sm:$0xff] %v472
    %497 = vst [vmem:[%s5 + $0x58] sm:$0xff] %v474
    %498 = vst [vmem:[%s5 + $0x60] sm:$0xff] %v477
    %499 = vst [vmem:[%s5 + $0x68] sm:$0xff] %v479
    %500 = vst [vmem:[%s5 + $0x70] sm:$0xff] %v482
    %501 = vst [vmem:[%s5 + $0x78] sm:$0xff] %v484
    // Predicated region
    $region26: #{apply.1} parent=1 // pred_check
      _
    $region27: #{apply.1} parent=1 // pred_check_branch
      %503 = sbr.rel (0) target = $region29
    $region28: #{apply.1} parent=1 // pred_region
      _
    $region29: #{apply.1} parent=1 // pred_fallthru
      _
    // Predicated region
    $region30: #{apply.1} parent=1 // pred_check
      _
    $region31: #{apply.1} parent=1 // pred_check_branch
      %505 = sbr.rel (0) target = $region33
    $region32: #{apply.1} parent=1 // pred_region
      _
    $region33: #{apply.1} parent=1 // pred_fallthru
      _
    %506 = vsyncpa [#allocation3], 1

</llo_original>
